<compile_context>
chip_gen: v7x
topology: tpu7x:2x2x1
jax: 0.10.0
libtpu: 0.0.40
codegen_flags: <defaults>
</compile_context>

<pallas_src>
import functools

import jax
import jax.numpy as jnp
from jax import lax
from jax.experimental import pallas as pl
from jax.experimental.pallas import tpu as pltpu


def _round_up(x, m):
    return (x + m - 1) // m * m


# ---------------------------------------------------------------------------
# Pallas kernel: fused depthwise KxK conv + pointwise 1x1 conv.
# ---------------------------------------------------------------------------
def _dwpw_kernel(x_ref, wdw_ref, wpw_ref, bias_ref, o_ref, *, K, Wp, lane):
    # x_ref:    (1, C, L)       C = pack*C_in rows, each an independent padded
    #                           image-channel stream; L is a multiple of 128.
    # wdw_ref:  (K*K, C, lane)  lane-replicated, spectral-normalized dw weights.
    # wpw_ref:  (Co, C)         block-diagonal pointwise weights (Co = pack*C_out).
    # bias_ref: (Co, 1)         fused bias  b_pw + W_pw @ b_dw, f32.
    # o_ref:    (1, Co, L)      full padded-domain output (cropped outside).
    x = x_ref[0].astype(jnp.float32)               # (C, L), f32 accumulation
    L = x.shape[-1]
    reps = L // lane

    def tap_w(t):
        w = wdw_ref[t]                             # (C, lane), already lane-dense
        if reps > 1:
            # Expand to (C, L) via vreg copies: no XLU lane-splat per tap.
            w = jnp.concatenate([w] * reps, axis=-1)
        return w

    # Depthwise conv over the whole padded domain:
    #   acc[c, i] = sum_{kh,kw} w_dw[c, kh*K+kw] * x[c, i + kh*Wp + kw]
    # Each tap = one XLU lane-rotate + one full-vreg VPU FMA.  Rotate wrap only
    # hits positions discarded by the post-kernel crop (see invariant above).
    acc = x * tap_w(0)                             # tap (0,0): shift 0, init
    for kh in range(K):
        for kw in range(K):
            t = kh * K + kw
            if t == 0:
                continue
            s = kh * Wp + kw
            x_s = pltpu.roll(x, shift=L - s, axis=1)   # x_s[i] = x[(i+s) % L]
            acc = acc + x_s * tap_w(t)

    # Pointwise 1x1 conv: one small MXU matmul directly on the f32 accumulator
    # (no bf16 cast pass); biases pre-folded into one epilogue vector.
    out = jnp.dot(wpw_ref[...], acc, preferred_element_type=jnp.float32)
    out = out + bias_ref[...]
    o_ref[0] = out.astype(o_ref.dtype)


# ---------------------------------------------------------------------------
# Spectral norm (plain-JAX parameter glue; short fori_loop power iteration).
# TODO(synk): torch.nn.utils.spectral_norm does ONE power-iteration step per
# forward with persistent u/v buffers; this stateless approximation converges
# to the same sigma but is not bit-identical to torch's stateful schedule.
# ---------------------------------------------------------------------------
def _spectral_normalize(w, n_iters=10):
    w2d = w.reshape(w.shape[0], -1)
    v0 = jnp.ones((w2d.shape[1],), w2d.dtype) / jnp.sqrt(float(w2d.shape[1]))

    def body(_, v):
        u = w2d @ v
        u = u / (jnp.linalg.norm(u) + 1e-12)
        v = w2d.T @ u
        return v / (jnp.linalg.norm(v) + 1e-12)

    v = lax.fori_loop(0, n_iters, body, v0)
    u = w2d @ v
    u = u / (jnp.linalg.norm(u) + 1e-12)
    sigma = u @ (w2d @ v)
    return w / sigma


# ---------------------------------------------------------------------------
# Wrapper: spectral norm, bias folding, free-reshape layout, pallas_call.
# ---------------------------------------------------------------------------
@functools.partial(jax.jit,
                   static_argnames=("kernel_size", "padding", "stride",
                                    "io_dtype", "sn_iters"))
def depthwise_conv2d(x, w_dw, b_dw, w_pw, b_pw, *, kernel_size, padding,
                     stride, io_dtype=jnp.bfloat16, sn_iters=10):
    N, C_in, H, W = x.shape
    K = kernel_size
    C_out = w_pw.shape[0]
    Hp, Wp = H + 2 * padding, W + 2 * padding
    H_out = (Hp - K) // stride + 1
    W_out = (Wp - K) // stride + 1
    img = Hp * Wp
    LANE = 128
    L = _round_up(img, LANE)                     # lane-dense, unmasked stores

    # ---- spectral norm + bias folding (parameter glue) ----
    w_dw_n = _spectral_normalize(w_dw, sn_iters).reshape(C_in, K * K)
    w_dw_n = w_dw_n.astype(jnp.float32)
    w_pw_n = _spectral_normalize(w_pw, sn_iters).reshape(C_out, C_in)
    w_pw_n = w_pw_n.astype(jnp.float32)
    fused_b = b_pw.astype(jnp.float32) + w_pw_n @ b_dw.astype(jnp.float32)

    # ---- sublane packing: stack `pack` images along the channel axis with
    #      FREE reshapes so small C_in still fills f32 vregs. ----
    pack = 8 // C_in if (C_in < 8 and 8 % C_in == 0) else 1
    pack = min(pack, max(N, 1))
    while pack > 1 and (N + pack - 1) // pack < 2:
        pack //= 2                               # keep grid >= 2: both v7x TCs busy
    Np = ((N + pack - 1) // pack) * pack
    G = Np // pack                               # grid steps (one per image group)
    Ck_in, Ck_out = pack * C_in, pack * C_out

    # ---- parameters in kernel layout ----
    wdw_lane = jnp.broadcast_to(
        jnp.tile(w_dw_n.T, (1, pack))[:, :, None], (K * K, Ck_in, LANE))
    wpw_blk = jnp.kron(jnp.eye(pack, dtype=jnp.float32), w_pw_n)  # (Ck_out, Ck_in)
    bias_blk = jnp.tile(fused_b.reshape(C_out, 1), (pack, 1))     # (Ck_out, 1)

    # ---- input layout: cast to io_dtype, conv-pad, FREE reshapes, lane-pad.
    #      No transposes anywhere. ----
    x_pad = jnp.pad(x.astype(io_dtype),
                    ((0, Np - N), (0, 0),
                     (padding, padding), (padding, padding)))
    x_flat = x_pad.reshape(Np, C_in, img)
    x_flat = jnp.pad(x_flat, ((0, 0), (0, 0), (0, L - img)))
    x_flat = x_flat.reshape(G, Ck_in, L)

    # ---- realistic per-step VMEM estimate -> explicit vmem_limit_bytes ----
    in_b = jnp.dtype(io_dtype).itemsize
    out_b = jnp.dtype(x.dtype).itemsize
    est = (2 * Ck_in * L * in_b                          # double-buffered input
           + 2 * Ck_out * L * out_b                      # double-buffered output
           + 2 * (K * K * Ck_in * LANE + Ck_out * Ck_in + Ck_out) * 4  # weights
           + (4 * Ck_in + 2 * Ck_out) * L * 4)           # in-kernel f32 live values
    vmem_limit = int(min(max(2 * est, 4 * 1024 * 1024), 32 * 1024 * 1024))
    # TODO(synk): very large C*Hp*Wp blocks (>~ a few MiB) would need an extra
    # channel / lane tiling grid axis instead of one block per image group.

    kernel = functools.partial(_dwpw_kernel, K=K, Wp=Wp, lane=LANE)
    out_flat = pl.pallas_call(
        kernel,
        out_shape=jax.ShapeDtypeStruct((G, Ck_out, L), x.dtype),
        grid_spec=pltpu.PrefetchScalarGridSpec(
            num_scalar_prefetch=0,
            grid=(G,),
            in_specs=[
                pl.BlockSpec((1, Ck_in, L), lambda g: (g, 0, 0)),
                pl.BlockSpec((K * K, Ck_in, LANE), lambda g: (0, 0, 0)),
                pl.BlockSpec((Ck_out, Ck_in), lambda g: (0, 0)),
                pl.BlockSpec((Ck_out, 1), lambda g: (0, 0)),
            ],
            out_specs=pl.BlockSpec((1, Ck_out, L), lambda g: (g, 0, 0)),
        ),
        compiler_params=pltpu.CompilerParams(
            dimension_semantics=("parallel",),
            vmem_limit_bytes=vmem_limit),
    )(x_flat, wdw_lane, wpw_blk, bias_blk)

    # ---- reassembly: FREE reshape + slices (no transpose); conv stride is
    #      applied outside the kernel. ----
    # TODO(synk): for stride > 1, subsample acc in-kernel (the 1x1 conv
    # commutes with subsampling) to cut output HBM writes by stride**2.
    out = out_flat.reshape(Np, C_out, L)[:N, :, :img].reshape(N, C_out, Hp, Wp)
    out = out[:, :,
              0:(H_out - 1) * stride + 1:stride,
              0:(W_out - 1) * stride + 1:stride]
    return out


# ---------------------------------------------------------------------------
# Pure-JAX reference (lax convs) for verification.
# ---------------------------------------------------------------------------
def _reference(x, w_dw, b_dw, w_pw, b_pw, *, padding, stride):
    C_in = x.shape[1]
    w_dw_n = _spectral_normalize(w_dw)
    w_pw_n = _spectral_normalize(w_pw)
    y = lax.conv_general_dilated(
        x, w_dw_n, window_strides=(stride, stride),
        padding=((padding, padding), (padding, padding)),
        feature_group_count=C_in,
        dimension_numbers=("NCHW", "OIHW", "NCHW"))
    y = y + b_dw[None, :, None, None]
    z = lax.conv_general_dilated(
        y, w_pw_n, window_strides=(1, 1), padding="VALID",
        dimension_numbers=("NCHW", "OIHW", "NCHW"))
    return z + b_pw[None, :, None, None]


if __name__ == "__main__":
    key = jax.random.PRNGKey(0)
    k1, k2, k3, k4, k5, k6 = jax.random.split(key, 6)

    # DepthWiseConv2d(dim_in=4, dim_out=8, kernel_size=3, padding=1, stride=1)
    N, C_in, H, W = 2, 4, 16, 16
    C_out, K, padding, stride = 8, 3, 1, 1

    x = jax.random.normal(k1, (N, C_in, H, W), dtype=jnp.float32)
    # depthwise weight: (C_in, 1, K, K); pointwise: (C_out, C_in, 1, 1)
    w_dw = jax.random.normal(k2, (C_in, 1, K, K), dtype=jnp.float32) * 0.1
    b_dw = jax.random.normal(k3, (C_in,), dtype=jnp.float32) * 0.1
    w_pw = jax.random.normal(k4, (C_out, C_in, 1, 1), dtype=jnp.float32) * 0.1
    b_pw = jax.random.normal(k5, (C_out,), dtype=jnp.float32) * 0.1

    ref = _reference(x, w_dw, b_dw, w_pw, b_pw, padding=padding, stride=stride)

    # f32-I/O path: tight correctness check (N=2 -> pack=1, grid=2).
    out_f32 = depthwise_conv2d(x, w_dw, b_dw, w_pw, b_pw,
                               kernel_size=K, padding=padding, stride=stride,
                               io_dtype=jnp.float32)
    out_f32 = jax.block_until_ready(out_f32)
    assert out_f32.shape == ref.shape == (N, C_out, H, W)
    assert jnp.allclose(out_f32, ref, atol=1e-2, rtol=1e-2), "f32 I/O mismatch"

    # bf16-I/O path (default): activations DMA'd in bf16, f32 accumulation.
    out_bf16 = depthwise_conv2d(x, w_dw, b_dw, w_pw, b_pw,
                                kernel_size=K, padding=padding, stride=stride)
    out_bf16 = jax.block_until_ready(out_bf16)
    assert out_bf16.shape == ref.shape
    assert jnp.allclose(out_bf16, ref, atol=5e-2, rtol=5e-2), "bf16 I/O mismatch"

    # batch=4 exercises the sublane-packing path (pack=2, grid=2).
    x4 = jax.random.normal(k6, (4, C_in, H, W), dtype=jnp.float32)
    ref4 = _reference(x4, w_dw, b_dw, w_pw, b_pw, padding=padding, stride=stride)
    out4 = depthwise_conv2d(x4, w_dw, b_dw, w_pw, b_pw,
                            kernel_size=K, padding=padding, stride=stride,
                            io_dtype=jnp.float32)
    out4 = jax.block_until_ready(out4)
    assert out4.shape == ref4.shape == (4, C_out, H, W)
    assert jnp.allclose(out4, ref4, atol=1e-2, rtol=1e-2), "packed path mismatch"

    print("KERNEL_OK")
</pallas_src>

<mosaic_0001>
module attributes {stable_mosaic.version = 11 : i64} {
  func.func @_dwpw_kernel(%arg0: i32, %arg1: memref<1x4x384xf32, #tpu.memory_space<vmem>>, %arg2: memref<9x4x128xf32, #tpu.memory_space<vmem>>, %arg3: memref<8x4xf32, #tpu.memory_space<vmem>>, %arg4: memref<8x1xf32, #tpu.memory_space<vmem>>, %arg5: memref<1x8x384xf32, #tpu.memory_space<vmem>>) attributes {dimension_semantics = [#tpu.dimension_semantics<parallel>], iteration_bounds = array<i64: 2>, scalar_prefetch = 0 : i64, scratch_operands = 0 : i64, tpu.core_type = #tpu.core_type<tc>, window_params = [{transform_indices = @transform_0, window_bounds = array<i64: 1, 4, 384>}, {pipeline_mode = #tpu.pipeline_mode<synchronous>, transform_indices = @transform_1, window_bounds = array<i64: 9, 4, 128>}, {pipeline_mode = #tpu.pipeline_mode<synchronous>, transform_indices = @transform_2, window_bounds = array<i64: 8, 4>}, {pipeline_mode = #tpu.pipeline_mode<synchronous>, transform_indices = @transform_3, window_bounds = array<i64: 8, 1>}, {transform_indices = @transform_4, window_bounds = array<i64: 1, 8, 384>}]} {
    %c0 = arith.constant 0 : index
    %c0_0 = arith.constant 0 : index
    %c0_1 = arith.constant 0 : index
    %0 = vector.load %arg1[%c0, %c0_0, %c0_1] : memref<1x4x384xf32, #tpu.memory_space<vmem>>, vector<1x4x384xf32>
    %1 = vector.shape_cast %0 : vector<1x4x384xf32> to vector<4x384xf32>
    %c0_2 = arith.constant 0 : index
    %c0_3 = arith.constant 0 : index
    %c0_4 = arith.constant 0 : index
    %2 = vector.load %arg2[%c0_2, %c0_3, %c0_4] : memref<9x4x128xf32, #tpu.memory_space<vmem>>, vector<1x4x128xf32>
    %3 = vector.shape_cast %2 : vector<1x4x128xf32> to vector<4x128xf32>
    %4 = tpu.concatenate %3, %3, %3 in 1 : vector<4x128xf32>, vector<4x128xf32>, vector<4x128xf32> -> vector<4x384xf32>
    %5 = arith.mulf %1, %4 : vector<4x384xf32>
    %c383_i32 = arith.constant 383 : i32
    %6 = tpu.dynamic_rotate %1 by %c383_i32 dim 1 : vector<4x384xf32>, i32 -> vector<4x384xf32>
    %c1 = arith.constant 1 : index
    %c0_5 = arith.constant 0 : index
    %c0_6 = arith.constant 0 : index
    %7 = vector.load %arg2[%c1, %c0_5, %c0_6] : memref<9x4x128xf32, #tpu.memory_space<vmem>>, vector<1x4x128xf32>
    %8 = vector.shape_cast %7 : vector<1x4x128xf32> to vector<4x128xf32>
    %9 = tpu.concatenate %8, %8, %8 in 1 : vector<4x128xf32>, vector<4x128xf32>, vector<4x128xf32> -> vector<4x384xf32>
    %10 = arith.mulf %6, %9 : vector<4x384xf32>
    %11 = arith.addf %5, %10 : vector<4x384xf32>
    %c382_i32 = arith.constant 382 : i32
    %12 = tpu.dynamic_rotate %1 by %c382_i32 dim 1 : vector<4x384xf32>, i32 -> vector<4x384xf32>
    %c2 = arith.constant 2 : index
    %c0_7 = arith.constant 0 : index
    %c0_8 = arith.constant 0 : index
    %13 = vector.load %arg2[%c2, %c0_7, %c0_8] : memref<9x4x128xf32, #tpu.memory_space<vmem>>, vector<1x4x128xf32>
    %14 = vector.shape_cast %13 : vector<1x4x128xf32> to vector<4x128xf32>
    %15 = tpu.concatenate %14, %14, %14 in 1 : vector<4x128xf32>, vector<4x128xf32>, vector<4x128xf32> -> vector<4x384xf32>
    %16 = arith.mulf %12, %15 : vector<4x384xf32>
    %17 = arith.addf %11, %16 : vector<4x384xf32>
    %c366_i32 = arith.constant 366 : i32
    %18 = tpu.dynamic_rotate %1 by %c366_i32 dim 1 : vector<4x384xf32>, i32 -> vector<4x384xf32>
    %c3 = arith.constant 3 : index
    %c0_9 = arith.constant 0 : index
    %c0_10 = arith.constant 0 : index
    %19 = vector.load %arg2[%c3, %c0_9, %c0_10] : memref<9x4x128xf32, #tpu.memory_space<vmem>>, vector<1x4x128xf32>
    %20 = vector.shape_cast %19 : vector<1x4x128xf32> to vector<4x128xf32>
    %21 = tpu.concatenate %20, %20, %20 in 1 : vector<4x128xf32>, vector<4x128xf32>, vector<4x128xf32> -> vector<4x384xf32>
    %22 = arith.mulf %18, %21 : vector<4x384xf32>
    %23 = arith.addf %17, %22 : vector<4x384xf32>
    %c365_i32 = arith.constant 365 : i32
    %24 = tpu.dynamic_rotate %1 by %c365_i32 dim 1 : vector<4x384xf32>, i32 -> vector<4x384xf32>
    %c4 = arith.constant 4 : index
    %c0_11 = arith.constant 0 : index
    %c0_12 = arith.constant 0 : index
    %25 = vector.load %arg2[%c4, %c0_11, %c0_12] : memref<9x4x128xf32, #tpu.memory_space<vmem>>, vector<1x4x128xf32>
    %26 = vector.shape_cast %25 : vector<1x4x128xf32> to vector<4x128xf32>
    %27 = tpu.concatenate %26, %26, %26 in 1 : vector<4x128xf32>, vector<4x128xf32>, vector<4x128xf32> -> vector<4x384xf32>
    %28 = arith.mulf %24, %27 : vector<4x384xf32>
    %29 = arith.addf %23, %28 : vector<4x384xf32>
    %c364_i32 = arith.constant 364 : i32
    %30 = tpu.dynamic_rotate %1 by %c364_i32 dim 1 : vector<4x384xf32>, i32 -> vector<4x384xf32>
    %c5 = arith.constant 5 : index
    %c0_13 = arith.constant 0 : index
    %c0_14 = arith.constant 0 : index
    %31 = vector.load %arg2[%c5, %c0_13, %c0_14] : memref<9x4x128xf32, #tpu.memory_space<vmem>>, vector<1x4x128xf32>
    %32 = vector.shape_cast %31 : vector<1x4x128xf32> to vector<4x128xf32>
    %33 = tpu.concatenate %32, %32, %32 in 1 : vector<4x128xf32>, vector<4x128xf32>, vector<4x128xf32> -> vector<4x384xf32>
    %34 = arith.mulf %30, %33 : vector<4x384xf32>
    %35 = arith.addf %29, %34 : vector<4x384xf32>
    %c348_i32 = arith.constant 348 : i32
    %36 = tpu.dynamic_rotate %1 by %c348_i32 dim 1 : vector<4x384xf32>, i32 -> vector<4x384xf32>
    %c6 = arith.constant 6 : index
    %c0_15 = arith.constant 0 : index
    %c0_16 = arith.constant 0 : index
    %37 = vector.load %arg2[%c6, %c0_15, %c0_16] : memref<9x4x128xf32, #tpu.memory_space<vmem>>, vector<1x4x128xf32>
    %38 = vector.shape_cast %37 : vector<1x4x128xf32> to vector<4x128xf32>
    %39 = tpu.concatenate %38, %38, %38 in 1 : vector<4x128xf32>, vector<4x128xf32>, vector<4x128xf32> -> vector<4x384xf32>
    %40 = arith.mulf %36, %39 : vector<4x384xf32>
    %41 = arith.addf %35, %40 : vector<4x384xf32>
    %c347_i32 = arith.constant 347 : i32
    %42 = tpu.dynamic_rotate %1 by %c347_i32 dim 1 : vector<4x384xf32>, i32 -> vector<4x384xf32>
    %c7 = arith.constant 7 : index
    %c0_17 = arith.constant 0 : index
    %c0_18 = arith.constant 0 : index
    %43 = vector.load %arg2[%c7, %c0_17, %c0_18] : memref<9x4x128xf32, #tpu.memory_space<vmem>>, vector<1x4x128xf32>
    %44 = vector.shape_cast %43 : vector<1x4x128xf32> to vector<4x128xf32>
    %45 = tpu.concatenate %44, %44, %44 in 1 : vector<4x128xf32>, vector<4x128xf32>, vector<4x128xf32> -> vector<4x384xf32>
    %46 = arith.mulf %42, %45 : vector<4x384xf32>
    %47 = arith.addf %41, %46 : vector<4x384xf32>
    %c346_i32 = arith.constant 346 : i32
    %48 = tpu.dynamic_rotate %1 by %c346_i32 dim 1 : vector<4x384xf32>, i32 -> vector<4x384xf32>
    %c8 = arith.constant 8 : index
    %c0_19 = arith.constant 0 : index
    %c0_20 = arith.constant 0 : index
    %49 = vector.load %arg2[%c8, %c0_19, %c0_20] : memref<9x4x128xf32, #tpu.memory_space<vmem>>, vector<1x4x128xf32>
    %50 = vector.shape_cast %49 : vector<1x4x128xf32> to vector<4x128xf32>
    %51 = tpu.concatenate %50, %50, %50 in 1 : vector<4x128xf32>, vector<4x128xf32>, vector<4x128xf32> -> vector<4x384xf32>
    %52 = arith.mulf %48, %51 : vector<4x384xf32>
    %53 = arith.addf %47, %52 : vector<4x384xf32>
    %c0_21 = arith.constant 0 : index
    %c0_22 = arith.constant 0 : index
    %54 = vector.load %arg3[%c0_21, %c0_22] : memref<8x4xf32, #tpu.memory_space<vmem>>, vector<8x4xf32>
    %cst = arith.constant dense<0.000000e+00> : vector<8x384xf32>
    %55 = tpu.matmul %54, %53, %cst {dimension_numbers = #tpu.dot_dimension_numbers<[1], [0], [0], [1], [0, 0, 1, 1], [], []>} : vector<8x4xf32>, vector<4x384xf32>, vector<8x384xf32> -> vector<8x384xf32>
    %c0_23 = arith.constant 0 : index
    %c0_24 = arith.constant 0 : index
    %56 = vector.load %arg4[%c0_23, %c0_24] : memref<8x1xf32, #tpu.memory_space<vmem>>, vector<8x1xf32>
    %57 = vector.broadcast %56 : vector<8x1xf32> to vector<8x384xf32>
    %58 = arith.addf %55, %57 : vector<8x384xf32>
    %c0_25 = arith.constant 0 : index
    %c0_26 = arith.constant 0 : index
    %c0_27 = arith.constant 0 : index
    %59 = vector.load %arg5[%c0_25, %c0_26, %c0_27] : memref<1x8x384xf32, #tpu.memory_space<vmem>>, vector<1x8x384xf32>
    %60 = vector.shape_cast %59 : vector<1x8x384xf32> to vector<8x384xf32>
    %61 = vector.shape_cast %58 : vector<8x384xf32> to vector<1x8x384xf32>
    tpu.vector_store %arg5[%c0_25, %c0_26, %c0_27], %61 {strides = array<i32>} : memref<1x8x384xf32, #tpu.memory_space<vmem>>, vector<1x8x384xf32>,
    return
  }
  func.func @transform_0(%arg0: i32) -> (i32, i32, i32) {
    %c0_i32 = arith.constant 0 : i32
    %c0_i32_0 = arith.constant 0 : i32
    %c0_i32_1 = arith.constant 0 : i32
    return %arg0, %c0_i32, %c0_i32_0 : i32, i32, i32
  }
  func.func @transform_1(%arg0: i32) -> (i32, i32, i32) {
    %c0_i32 = arith.constant 0 : i32
    %c0_i32_0 = arith.constant 0 : i32
    %c0_i32_1 = arith.constant 0 : i32
    %c0_i32_2 = arith.constant 0 : i32
    return %c0_i32, %c0_i32_0, %c0_i32_1 : i32, i32, i32
  }
  func.func @transform_2(%arg0: i32) -> (i32, i32) {
    %c0_i32 = arith.constant 0 : i32
    %c0_i32_0 = arith.constant 0 : i32
    %c0_i32_1 = arith.constant 0 : i32
    return %c0_i32, %c0_i32_0 : i32, i32
  }
  func.func @transform_3(%arg0: i32) -> (i32, i32) {
    %c0_i32 = arith.constant 0 : i32
    %c0_i32_0 = arith.constant 0 : i32
    %c0_i32_1 = arith.constant 0 : i32
    return %c0_i32, %c0_i32_0 : i32, i32
  }
  func.func @transform_4(%arg0: i32) -> (i32, i32, i32) {
    %c0_i32 = arith.constant 0 : i32
    %c0_i32_0 = arith.constant 0 : i32
    %c0_i32_1 = arith.constant 0 : i32
    return %arg0, %c0_i32, %c0_i32_0 : i32, i32, i32
  }
}

</mosaic_0001>

<llo_original>
// kernel: custom-call
$region0: #{custom-call}
  %s0 = inlined_call_operand.vmem [shape: f32[9], index: 0, kind: output, shape index: {}]

// kernel: custom-call.1
$region0: #{custom-call.1}
  %s0 = inlined_call_operand.vmem [shape: f32[4], index: 0, kind: output, shape index: {}]

// kernel: depthwise_conv2d.1
$region0: #{depthwise_conv2d.1}
  #allocation0 [shape = 'u32[]', space=smem, size = 0x4, offset = 0x4, fixed_abs, tag = 'smem constant byte address 0x4 - core index']
  #allocation1 [shape = 'u32[144,128]{1,0:T(1,128)}', space=vmem, size = 0x12000, scoped, tag = 'internal scratch']
  %s0 = inlined_call_operand.vmem [shape: f32[2,4,384], index: 0, kind: input, shape index: {}]
  %s1 = inlined_call_operand.vmem [shape: f32[9,4,128], index: 1, kind: input, shape index: {}]
  %s2 = inlined_call_operand.vmem [shape: f32[8,4], index: 2, kind: input, shape index: {}]
  %s3 = inlined_call_operand.vmem [shape: f32[8,1], index: 3, kind: input, shape index: {}]
  %s4 = inlined_call_operand.vmem [shape: f32[2,8,384], index: 4, kind: output, shape index: {}]
  %s5 = sld [smem:[#allocation0]]
  $region49: #{depthwise_conv2d.1} parent=0
    _
  %s7 = ssub.s32 1, %s5
  %s8 = scalar_select 0, %s7, %s5
  loop: start=0, step=1, limit=4
  $region2: #{depthwise_conv2d.1} parent=0 // loop_pre_header
    _
  $region3: #{depthwise_conv2d.1} parent=0 // loop_header
    %s10 = sphi 0, %s14
    %p11 = scmp.ge.s32.totalorder %s10, 4
    %s20 = sphi 0, %s22
    %s23 = sphi 0, %s20
    %s24 = sphi 0, %s23
    %s40 = sphi 0, %s24
    %s44 = sphi 0, %s44
    %s46 = sphi 0, %s44
    %s47 = sphi 0, %s46
    %s61 = sphi 0, %s47
    %s65 = sphi 0, %s65
    %s67 = sphi 0, %s65
    %s68 = sphi 0, %s67
    %s82 = sphi 0, %s68
    %s86 = sphi 0, %s86
    %s88 = sphi 0, %s86
    %s89 = sphi 0, %s88
    %s103 = sphi 0, %s89
    %s109 = sphi 0, %s111
    %s112 = sphi 0, %s109
    %s113 = sphi 0, %s112
    %s129 = sphi 0, %s113
  $region4: #{depthwise_conv2d.1} parent=0 // loop_header_branch
    %13 = sbr.rel (%p11) target = $region8
  $region5: #{depthwise_conv2d.1} parent=0 // loop_body
    %s15 = ssub.s32 %s10, 1
    %s16 = ssub.s32 %s10, 2
    %s17 = sadd.s32 %s10, 1
    %s18 = ssub.s32 %s10, %s17
    %p19 = scmp.eq.s32.totalorder %s18, 0
    %s21 = sadd.s32 %s20, 1
    %s22 = scalar_select %p19, %s20, %s21
    %p25 = pneg %p19
    %p26 = scmp.eq.s32.totalorder %s10, 1
    %p27 = por %p25, %p26
    %p28 = scmp.ne.s32.totalorder %s20, %s23
    %p29 = scmp.eq.s32.totalorder %s10, 0
    %p30 = por %p28, %p29
    %p31 = scmp.ne.s32.totalorder %s20, %s23
    %p32 = scmp.eq.s32.totalorder %s15, 1
    %p33 = por %p31, %p32
    %p34 = scmp.ne.s32.totalorder %s23, %s24
    %p35 = scmp.eq.s32.totalorder %s15, 0
    %p36 = por %p34, %p35
    %p37 = scmp.ne.s32.totalorder %s23, %s24
    %p38 = scmp.eq.s32.totalorder %s16, 1
    %p39 = por %p37, %p38
    %p41 = scmp.ne.s32.totalorder %s24, %s40
    %p42 = scmp.eq.s32.totalorder %s16, 0
    %p43 = por %p41, %p42
    %s45 = sadd.s32 %s44, 1
    %p48 = scmp.eq.s32.totalorder %s10, 1
    %p49 = scmp.ne.s32.totalorder %s44, %s46
    %p50 = scmp.eq.s32.totalorder %s10, 0
    %p51 = por %p49, %p50
    %p52 = scmp.ne.s32.totalorder %s44, %s46
    %p53 = scmp.eq.s32.totalorder %s15, 1
    %p54 = por %p52, %p53
    %p55 = scmp.ne.s32.totalorder %s46, %s47
    %p56 = scmp.eq.s32.totalorder %s15, 0
    %p57 = por %p55, %p56
    %p58 = scmp.ne.s32.totalorder %s46, %s47
    %p59 = scmp.eq.s32.totalorder %s16, 1
    %p60 = por %p58, %p59
    %p62 = scmp.ne.s32.totalorder %s47, %s61
    %p63 = scmp.eq.s32.totalorder %s16, 0
    %p64 = por %p62, %p63
    %s66 = sadd.s32 %s65, 1
    %p69 = scmp.eq.s32.totalorder %s10, 1
    %p70 = scmp.ne.s32.totalorder %s65, %s67
    %p71 = scmp.eq.s32.totalorder %s10, 0
    %p72 = por %p70, %p71
    %p73 = scmp.ne.s32.totalorder %s65, %s67
    %p74 = scmp.eq.s32.totalorder %s15, 1
    %p75 = por %p73, %p74
    %p76 = scmp.ne.s32.totalorder %s67, %s68
    %p77 = scmp.eq.s32.totalorder %s15, 0
    %p78 = por %p76, %p77
    %p79 = scmp.ne.s32.totalorder %s67, %s68
    %p80 = scmp.eq.s32.totalorder %s16, 1
    %p81 = por %p79, %p80
    %p83 = scmp.ne.s32.totalorder %s68, %s82
    %p84 = scmp.eq.s32.totalorder %s16, 0
    %p85 = por %p83, %p84
    %s87 = sadd.s32 %s86, 1
    %p90 = scmp.eq.s32.totalorder %s10, 1
    %p91 = scmp.ne.s32.totalorder %s86, %s88
    %p92 = scmp.eq.s32.totalorder %s10, 0
    %p93 = por %p91, %p92
    %p94 = scmp.ne.s32.totalorder %s86, %s88
    %p95 = scmp.eq.s32.totalorder %s15, 1
    %p96 = por %p94, %p95
    %p97 = scmp.ne.s32.totalorder %s88, %s89
    %p98 = scmp.eq.s32.totalorder %s15, 0
    %p99 = por %p97, %p98
    %p100 = scmp.ne.s32.totalorder %s88, %s89
    %p101 = scmp.eq.s32.totalorder %s16, 1
    %p102 = por %p100, %p101
    %p104 = scmp.ne.s32.totalorder %s89, %s103
    %p105 = scmp.eq.s32.totalorder %s16, 0
    %p106 = por %p104, %p105
    %s107 = ssub.s32 %s10, %s17
    %p108 = scmp.eq.s32.totalorder %s107, 0
    %s110 = sadd.s32 %s109, 1
    %s111 = scalar_select %p108, %s109, %s110
    %p114 = pneg %p108
    %p115 = scmp.eq.s32.totalorder %s10, 1
    %p116 = por %p114, %p115
    %p117 = scmp.ne.s32.totalorder %s109, %s112
    %p118 = scmp.eq.s32.totalorder %s10, 0
    %p119 = por %p117, %p118
    %p120 = scmp.ne.s32.totalorder %s109, %s112
    %p121 = scmp.eq.s32.totalorder %s15, 1
    %p122 = por %p120, %p121
    %p123 = scmp.ne.s32.totalorder %s112, %s113
    %p124 = scmp.eq.s32.totalorder %s15, 0
    %p125 = por %p123, %p124
    %p126 = scmp.ne.s32.totalorder %s112, %s113
    %p127 = scmp.eq.s32.totalorder %s16, 1
    %p128 = por %p126, %p127
    %p130 = scmp.ne.s32.totalorder %s113, %s129
    %p131 = scmp.eq.s32.totalorder %s16, 0
    %p132 = por %p130, %p131
    %p133 = scmp.le.s32.totalorder 1, %s10
    %p134 = scmp.lt.s32.totalorder %s10, 3
    %p135 = pnand %p133, %p134
    %p136 = pneg %p135
    // Predicated region
    $region9: #{depthwise_conv2d.1} parent=5 // pred_check
      _
    $region10: #{depthwise_conv2d.1} parent=5 // pred_check_branch
      %138 = sbr.rel (%p135) target = $region12
    $region11: #{depthwise_conv2d.1} parent=5 // pred_region
      %s139 = ssub.s32 %s10, 1
      // Predicated region
      $region13: #{depthwise_conv2d.1} parent=11 // pred_check
        %p140 = pneg %p57
      $region14: #{depthwise_conv2d.1} parent=11 // pred_check_branch
        %142 = sbr.rel (%p140) target = $region16
      $region15: #{depthwise_conv2d.1} parent=11 // pred_region
        _
      $region16: #{depthwise_conv2d.1} parent=11 // pred_fallthru
        _
      // Predicated region
      $region17: #{depthwise_conv2d.1} parent=11 // pred_check
        %p143 = pneg %p78
      $region18: #{depthwise_conv2d.1} parent=11 // pred_check_branch
        %145 = sbr.rel (%p143) target = $region20
      $region19: #{depthwise_conv2d.1} parent=11 // pred_region
        _
      $region20: #{depthwise_conv2d.1} parent=11 // pred_fallthru
        _
      // Predicated region
      $region21: #{depthwise_conv2d.1} parent=11 // pred_check
        %p146 = pneg %p99
      $region22: #{depthwise_conv2d.1} parent=11 // pred_check_branch
        %148 = sbr.rel (%p146) target = $region24
      $region23: #{depthwise_conv2d.1} parent=11 // pred_region
        _
      $region24: #{depthwise_conv2d.1} parent=11 // pred_fallthru
        _
    $region12: #{depthwise_conv2d.1} parent=5 // pred_fallthru
      _
    %p149 = scmp.lt.s32.totalorder %s10, 2
    // Predicated region
    $region25: #{depthwise_conv2d.1} parent=5 // pred_check
      %p150 = pneg %p149
    $region26: #{depthwise_conv2d.1} parent=5 // pred_check_branch
      %152 = sbr.rel (%p150) target = $region28
    $region27: #{depthwise_conv2d.1} parent=5 // pred_region
      // Predicated region
      $region29: #{depthwise_conv2d.1} parent=27 // pred_check
        %p153 = pneg %p30
      $region30: #{depthwise_conv2d.1} parent=27 // pred_check_branch
        %155 = sbr.rel (%p153) target = $region32
      $region31: #{depthwise_conv2d.1} parent=27 // pred_region
        %p156 = scmp.lt.s32.totalorder %s10, 1
        %s157 = scalar_select %p156, %s10, 1
        %s158 = smul.addr %s157, 3
        %s159 = smul.addr %s158, 4
        %s160 = scalar_lea.vmem %s0, %s159
      $region32: #{depthwise_conv2d.1} parent=27 // pred_fallthru
        _
    $region28: #{depthwise_conv2d.1} parent=5 // pred_fallthru
      _
    %p161 = scmp.le.s32.totalorder 1, %s10
    %p162 = scmp.lt.s32.totalorder %s10, 3
    %p163 = pnand %p161, %p162
    %p164 = pneg %p163
    // Predicated region
    $region33: #{depthwise_conv2d.1} parent=5 // pred_check
      _
    $region34: #{depthwise_conv2d.1} parent=5 // pred_check_branch
      %166 = sbr.rel (%p163) target = $region36
    $region35: #{depthwise_conv2d.1} parent=5 // pred_region
      %s167 = ssub.s32 %s10, 1
      %p168 = scmp.lt.s32.totalorder %s15, 1
      %s169 = scalar_select %p168, %s15, 1
      %s170 = smul.addr %s169, 3
      %s171 = smul.addr %s170, 4
      %s172 = scalar_lea.vmem %s0, %s171
      %p173 = pneg %p36
      %p174 = pneg %p33
      %p175 = pneg %p57
      %p176 = pneg %p54
      %p177 = pneg %p78
      %p178 = pneg %p75
      %p179 = pneg %p99
      %p180 = pneg %p96
      %p181 = pneg %p125
      %p182 = pneg %p122
      %p183 = scmp.lt.s32.totalorder %s15, 1
      %s184 = scalar_select %p183, %s15, 1
      %s185 = smul.addr %s184, 3
      %s186 = smul.addr %s185, 8
      %s187 = scalar_lea.vmem %s4, %s186
      %p188 = scmp.lt.s32.totalorder %s15, 1
      %s189 = scalar_select %p188, %s15, 1
      %s190 = smul.addr %s189, 3
      %s191 = smul.addr %s190, 4
      %s192 = scalar_lea.vmem %s0, %s191
      %p193 = scmp.lt.s32.totalorder %s15, 1
      %s194 = scalar_select %p193, %s15, 1
      %s195 = smul.addr %s194, 3
      %s196 = smul.addr %s195, 8
      %s197 = scalar_lea.vmem %s4, %s196
      %v198 = vld [vmem:[%s192] sm:$0xff]
      %v199 = vld [vmem:[%s192 + $0x8] sm:$0xf]
      %v200 = vld [vmem:[%s1] sm:$0xf]
      %v202 = vcombine.low %v200, %v200
      %v204 = vmul.f32 %v198, %v202
      %v205 = vmul.f32 %v199, %v200
      %v207 = vcombine.high %v198, %v198
      %209 = vrot.lane.b32.xlu0 %v198, 127
      %v210 = vpop.permute.xlu0 %209
      %211 = vrot.lane.b32.xlu0 %v207, 127
      %v212 = vpop.permute.xlu0 %211
      %213 = vrot.lane.b32.xlu0 %v199, 127
      %v214 = vpop.permute.xlu0 %213
      %v215 = vlaneseq
      %v216 = vand.u32 %v215, 127
      %vm217 = vcmp.lt.s32.totalorder %v216, 127
      %v218 = vsel %vm217, %v212, %v214
      %v219 = vsel %vm217, %v210, %v212
      %v220 = vsel %vm217, %v214, %v210
      %s221 = scalar_lea.vmem %s1, 4
      %v222 = vld [vmem:[%s221] sm:$0xf]
      %v223 = vmul.f32 %v219, %v222
      %v224 = vmul.f32 %v218, %v222
      %v225 = vmul.f32 %v220, %v222
      %v228 = vcombine.low %v223, %v224
      %v230 = vadd.f32 %v204, %v228
      %v231 = vadd.f32 %v205, %v225
      %232 = vrot.lane.b32.xlu0 %v198, 126
      %v233 = vpop.permute.xlu0 %232
      %234 = vrot.lane.b32.xlu0 %v207, 126
      %v235 = vpop.permute.xlu0 %234
      %236 = vrot.lane.b32.xlu0 %v199, 126
      %v237 = vpop.permute.xlu0 %236
      %vm238 = vcmp.lt.s32.totalorder %v216, 126
      %v239 = vsel %vm238, %v235, %v237
      %v240 = vsel %vm238, %v233, %v235
      %v241 = vsel %vm238, %v237, %v233
      %s242 = scalar_lea.vmem %s1, 8
      %v243 = vld [vmem:[%s242] sm:$0xf]
      %v244 = vmul.f32 %v240, %v243
      %v245 = vmul.f32 %v239, %v243
      %v246 = vmul.f32 %v241, %v243
      %v249 = vcombine.low %v244, %v245
      %v251 = vadd.f32 %v230, %v249
      %v252 = vadd.f32 %v231, %v246
      %253 = vrot.lane.b32.xlu0 %v198, 110
      %v254 = vpop.permute.xlu0 %253
      %255 = vrot.lane.b32.xlu0 %v207, 110
      %v256 = vpop.permute.xlu0 %255
      %257 = vrot.lane.b32.xlu0 %v199, 110
      %v258 = vpop.permute.xlu0 %257
      %vm259 = vcmp.lt.s32.totalorder %v216, 110
      %v260 = vsel %vm259, %v256, %v258
      %v261 = vsel %vm259, %v254, %v256
      %v262 = vsel %vm259, %v258, %v254
      %s263 = scalar_lea.vmem %s1, 12
      %v264 = vld [vmem:[%s263] sm:$0xf]
      %v265 = vmul.f32 %v261, %v264
      %v266 = vmul.f32 %v260, %v264
      %v267 = vmul.f32 %v262, %v264
      %v270 = vcombine.low %v265, %v266
      %v272 = vadd.f32 %v251, %v270
      %v273 = vadd.f32 %v252, %v267
      %274 = vrot.lane.b32.xlu0 %v198, 109
      %v275 = vpop.permute.xlu0 %274
      %276 = vrot.lane.b32.xlu0 %v207, 109
      %v277 = vpop.permute.xlu0 %276
      %278 = vrot.lane.b32.xlu0 %v199, 109
      %v279 = vpop.permute.xlu0 %278
      %vm280 = vcmp.lt.s32.totalorder %v216, 109
      %v281 = vsel %vm280, %v277, %v279
      %v282 = vsel %vm280, %v275, %v277
      %v283 = vsel %vm280, %v279, %v275
      %s284 = scalar_lea.vmem %s1, 16
      %v285 = vld [vmem:[%s284] sm:$0xf]
      %v286 = vmul.f32 %v282, %v285
      %v287 = vmul.f32 %v281, %v285
      %v288 = vmul.f32 %v283, %v285
      %v291 = vcombine.low %v286, %v287
      %v293 = vadd.f32 %v272, %v291
      %v294 = vadd.f32 %v273, %v288
      %295 = vrot.lane.b32.xlu0 %v198, 108
      %v296 = vpop.permute.xlu0 %295
      %297 = vrot.lane.b32.xlu0 %v207, 108
      %v298 = vpop.permute.xlu0 %297
      %299 = vrot.lane.b32.xlu0 %v199, 108
      %v300 = vpop.permute.xlu0 %299
      %vm301 = vcmp.lt.s32.totalorder %v216, 108
      %v302 = vsel %vm301, %v298, %v300
      %v303 = vsel %vm301, %v296, %v298
      %v304 = vsel %vm301, %v300, %v296
      %s305 = scalar_lea.vmem %s1, 20
      %v306 = vld [vmem:[%s305] sm:$0xf]
      %v307 = vmul.f32 %v303, %v306
      %v308 = vmul.f32 %v302, %v306
      %v309 = vmul.f32 %v304, %v306
      %v312 = vcombine.low %v307, %v308
      %v314 = vadd.f32 %v293, %v312
      %v315 = vadd.f32 %v294, %v309
      %316 = vrot.lane.b32.xlu0 %v198, 92
      %v317 = vpop.permute.xlu0 %316
      %318 = vrot.lane.b32.xlu0 %v207, 92
      %v319 = vpop.permute.xlu0 %318
      %320 = vrot.lane.b32.xlu0 %v199, 92
      %v321 = vpop.permute.xlu0 %320
      %vm322 = vcmp.lt.s32.totalorder %v216, 92
      %v323 = vsel %vm322, %v319, %v321
      %v324 = vsel %vm322, %v317, %v319
      %v325 = vsel %vm322, %v321, %v317
      %s326 = scalar_lea.vmem %s1, 24
      %v327 = vld [vmem:[%s326] sm:$0xf]
      %v328 = vmul.f32 %v324, %v327
      %v329 = vmul.f32 %v323, %v327
      %v330 = vmul.f32 %v325, %v327
      %v333 = vcombine.low %v328, %v329
      %v335 = vadd.f32 %v314, %v333
      %v336 = vadd.f32 %v315, %v330
      %337 = vrot.lane.b32.xlu0 %v198, 91
      %v338 = vpop.permute.xlu0 %337
      %339 = vrot.lane.b32.xlu0 %v207, 91
      %v340 = vpop.permute.xlu0 %339
      %341 = vrot.lane.b32.xlu0 %v199, 91
      %v342 = vpop.permute.xlu0 %341
      %vm343 = vcmp.lt.s32.totalorder %v216, 91
      %v344 = vsel %vm343, %v340, %v342
      %v345 = vsel %vm343, %v338, %v340
      %v346 = vsel %vm343, %v342, %v338
      %s347 = scalar_lea.vmem %s1, 28
      %v348 = vld [vmem:[%s347] sm:$0xf]
      %v349 = vmul.f32 %v345, %v348
      %v350 = vmul.f32 %v344, %v348
      %v351 = vmul.f32 %v346, %v348
      %v354 = vcombine.low %v349, %v350
      %v356 = vadd.f32 %v335, %v354
      %v357 = vadd.f32 %v336, %v351
      %358 = vrot.lane.b32.xlu0 %v198, 90
      %v359 = vpop.permute.xlu0 %358
      %360 = vrot.lane.b32.xlu0 %v207, 90
      %v361 = vpop.permute.xlu0 %360
      %362 = vrot.lane.b32.xlu0 %v199, 90
      %v363 = vpop.permute.xlu0 %362
      %vm364 = vcmp.lt.s32.totalorder %v216, 90
      %v365 = vsel %vm364, %v361, %v363
      %v366 = vsel %vm364, %v359, %v361
      %v367 = vsel %vm364, %v363, %v359
      %s368 = scalar_lea.vmem %s1, 32
      %v369 = vld [vmem:[%s368] sm:$0xf]
      %v370 = vmul.f32 %v366, %v369
      %v371 = vmul.f32 %v365, %v369
      %v372 = vmul.f32 %v367, %v369
      %v375 = vcombine.low %v370, %v371
      %v377 = vadd.f32 %v356, %v375
      %v378 = vadd.f32 %v357, %v372
      %v379 = vld [vmem:[%s2] sm:$0xff]
      %v380 = vld [vmem:[%s3] sm:$0xff]
      %382 = vset.pattern.permute.xlu0 0
      %383 = vperm.xlu0 %382, %v380
      %v384 = vpop.permute.xlu0 %383
      %v388 = vcombine.high %v377, %v377
      %vm389 = vcmask 31744
      %v391 = vsel %vm389, %v379, 0
      %vm393 = vcmask 1043456
      %v394 = vsel %vm393, %v377, 0
      %v396 = vsel %vm393, %v388, 0
      %v398 = vsel %vm393, %v378, 0
      %400 = vmatprep.subr.mxu0 %v396
      %401 = vmatpush1.msra.mxu0 %v394
      %402 = vmatprep.subr.mxu0 0.0
      %403 = vmatpush1.msra.mxu0 0.0
      %404 = vmatprep.subr.mxu0 0.0
      %405 = vmatpush1.msra.mxu0 0.0
      %406 = vmatprep.subr.mxu0 0.0
      %407 = vmatpush1.msra.mxu0 0.0
      %408 = vmatprep.subr.mxu0 0.0
      %409 = vmatpush1.msra.mxu0 0.0
      %410 = vmatprep.subr.mxu0 0.0
      %411 = vmatpush1.msra.mxu0 0.0
      %412 = vmatprep.subr.mxu0 0.0
      %413 = vmatpush1.msra.mxu0 0.0
      %414 = vmatprep.subr.mxu0 0.0
      %415 = vmatpush1.msra.mxu0 0.0
      %416 = vmatprep.subr.mxu0 0.0
      %417 = vmatpush1.msra.mxu0 0.0
      %418 = vmatprep.subr.mxu0 0.0
      %419 = vmatpush1.msra.mxu0 0.0
      %420 = vmatprep.subr.mxu0 0.0
      %421 = vmatpush1.msra.mxu0 0.0
      %422 = vmatprep.subr.mxu0 0.0
      %423 = vmatpush1.msra.mxu0 0.0
      %424 = vmatprep.subr.mxu0 0.0
      %425 = vmatpush1.msra.mxu0 0.0
      %426 = vmatprep.subr.mxu0 0.0
      %427 = vmatpush1.msra.mxu0 0.0
      %428 = vmatprep.subr.mxu0 0.0
      %429 = vmatpush1.msra.mxu0 0.0
      %430 = vmatprep.subr.mxu0 0.0
      %431 = vmatpush1.msra.mxu0 0.0
      %432 = vmatprep.subr.mxu0 0.0
      %433 = vmatpush1.msra.mxu0 0.0
      %434 = vmatprep.subr.mxu0 0.0
      %435 = vmatpush1.msra.mxu0 0.0
      %436 = vmatprep.subr.mxu0 0.0
      %437 = vmatpush1.msra.mxu0 0.0
      %438 = vmatprep.subr.mxu0 0.0
      %439 = vmatpush1.msra.mxu0 0.0
      %440 = vmatprep.subr.mxu0 0.0
      %441 = vmatpush1.msra.mxu0 0.0
      %442 = vmatprep.subr.mxu0 0.0
      %443 = vmatpush1.msra.mxu0 0.0
      %444 = vmatprep.subr.mxu0 0.0
      %445 = vmatpush1.msra.mxu0 0.0
      %446 = vmatprep.subr.mxu0 0.0
      %447 = vmatpush1.msra.mxu0 0.0
      %448 = vmatprep.subr.mxu0 0.0
      %449 = vmatpush1.msra.mxu0 0.0
      %450 = vmatprep.subr.mxu0 0.0
      %451 = vmatpush1.msra.mxu0 0.0
      %452 = vmatprep.subr.mxu0 0.0
      %453 = vmatpush1.msra.mxu0 0.0
      %454 = vmatprep.subr.mxu0 0.0
      %455 = vmatpush1.msra.mxu0 0.0
      %456 = vmatprep.subr.mxu0 0.0
      %457 = vmatpush1.msra.mxu0 0.0
      %458 = vmatprep.subr.mxu0 0.0
      %459 = vmatpush1.msra.mxu0 0.0
      %460 = vmatprep.subr.mxu0 0.0
      %461 = vmatpush1.msra.mxu0 0.0
      %462 = vmatprep.subr.mxu0 0.0
      %463 = vmatpush1.msra.mxu0 0.0
      %464 = vmatprep.mubr.f32.mxu0 0.0
      %465 = vmatmul.mubr.f32.gmra.mrb[0].mxu0 %v391
      %v466 = vpop.f32.mrb[0].mxu0
      %v467 = vadd.f32 %v384, %v466
      %v468 = vpop.f32.mrb[0].mxu0
      %v469 = vadd.f32 %v384, %v468
      %470 = vdwg.mxu0
      %471 = vmatprep.subr.mxu0 0.0
      %472 = vmatpush1.msra.mxu0 %v398
      %473 = vmatprep.subr.mxu0 0.0
      %474 = vmatpush1.msra.mxu0 0.0
      %475 = vmatprep.subr.mxu0 0.0
      %476 = vmatpush1.msra.mxu0 0.0
      %477 = vmatprep.subr.mxu0 0.0
      %478 = vmatpush1.msra.mxu0 0.0
      %479 = vmatprep.subr.mxu0 0.0
      %480 = vmatpush1.msra.mxu0 0.0
      %481 = vmatprep.subr.mxu0 0.0
      %482 = vmatpush1.msra.mxu0 0.0
      %483 = vmatprep.subr.mxu0 0.0
      %484 = vmatpush1.msra.mxu0 0.0
      %485 = vmatprep.subr.mxu0 0.0
      %486 = vmatpush1.msra.mxu0 0.0
      %487 = vmatprep.subr.mxu0 0.0
      %488 = vmatpush1.msra.mxu0 0.0
      %489 = vmatprep.subr.mxu0 0.0
      %490 = vmatpush1.msra.mxu0 0.0
      %491 = vmatprep.subr.mxu0 0.0
      %492 = vmatpush1.msra.mxu0 0.0
      %493 = vmatprep.subr.mxu0 0.0
      %494 = vmatpush1.msra.mxu0 0.0
      %495 = vmatprep.subr.mxu0 0.0
      %496 = vmatpush1.msra.mxu0 0.0
      %497 = vmatprep.subr.mxu0 0.0
      %498 = vmatpush1.msra.mxu0 0.0
      %499 = vmatprep.subr.mxu0 0.0
      %500 = vmatpush1.msra.mxu0 0.0
      %501 = vmatprep.subr.mxu0 0.0
      %502 = vmatpush1.msra.mxu0 0.0
      %503 = vmatprep.subr.mxu0 0.0
      %504 = vmatpush1.msra.mxu0 0.0
      %505 = vmatprep.subr.mxu0 0.0
      %506 = vmatpush1.msra.mxu0 0.0
      %507 = vmatprep.subr.mxu0 0.0
      %508 = vmatpush1.msra.mxu0 0.0
      %509 = vmatprep.subr.mxu0 0.0
      %510 = vmatpush1.msra.mxu0 0.0
      %511 = vmatprep.subr.mxu0 0.0
      %512 = vmatpush1.msra.mxu0 0.0
      %513 = vmatprep.subr.mxu0 0.0
      %514 = vmatpush1.msra.mxu0 0.0
      %515 = vmatprep.subr.mxu0 0.0
      %516 = vmatpush1.msra.mxu0 0.0
      %517 = vmatprep.subr.mxu0 0.0
      %518 = vmatpush1.msra.mxu0 0.0
      %519 = vmatprep.subr.mxu0 0.0
      %520 = vmatpush1.msra.mxu0 0.0
      %521 = vmatprep.subr.mxu0 0.0
      %522 = vmatpush1.msra.mxu0 0.0
      %523 = vmatprep.subr.mxu0 0.0
      %524 = vmatpush1.msra.mxu0 0.0
      %525 = vmatprep.subr.mxu0 0.0
      %526 = vmatpush1.msra.mxu0 0.0
      %527 = vmatprep.subr.mxu0 0.0
      %528 = vmatpush1.msra.mxu0 0.0
      %529 = vmatprep.subr.mxu0 0.0
      %530 = vmatpush1.msra.mxu0 0.0
      %531 = vmatprep.subr.mxu0 0.0
      %532 = vmatpush1.msra.mxu0 0.0
      %533 = vmatprep.subr.mxu0 0.0
      %534 = vmatpush1.msra.mxu0 0.0
      %535 = vmatprep.mubr.f32.mxu0 0.0
      %536 = vmatmul.mubr.f32.gmra.mrb[0].mxu0 %v391
      %v537 = vpop.f32.mrb[0].mxu0
      %v538 = vadd.f32 %v384, %v537
      %v539 = vpop.f32.mrb[0].mxu0
      %540 = vdwg.mxu0
      %541 = vst [vmem:[%s197] sm:$0xff] %v467
      %542 = vst [vmem:[%s197 + $0x8] sm:$0xff] %v469
      %543 = vst [vmem:[%s197 + $0x10] sm:$0xff] %v538
      %p544 = scmp.lt.s32.totalorder %s15, 1
      %s545 = scalar_select %p544, %s15, 1
      %s546 = smul.addr %s545, 3
      %s547 = smul.addr %s546, 8
      %s548 = scalar_lea.vmem %s4, %s547
      // Predicated region
      $region37: #{depthwise_conv2d.1} parent=35 // pred_check
        %p549 = pneg %p122
      $region38: #{depthwise_conv2d.1} parent=35 // pred_check_branch
        %551 = sbr.rel (%p549) target = $region40
      $region39: #{depthwise_conv2d.1} parent=35 // pred_region
        _
      $region40: #{depthwise_conv2d.1} parent=35 // pred_fallthru
        _
    $region36: #{depthwise_conv2d.1} parent=5 // pred_fallthru
      _
    %p552 = scmp.le.s32.totalorder 2, %s10
    // Predicated region
    $region41: #{depthwise_conv2d.1} parent=5 // pred_check
      %p553 = pneg %p552
    $region42: #{depthwise_conv2d.1} parent=5 // pred_check_branch
      %555 = sbr.rel (%p553) target = $region44
    $region43: #{depthwise_conv2d.1} parent=5 // pred_region
      %s556 = ssub.s32 %s10, 2
      // Predicated region
      $region45: #{depthwise_conv2d.1} parent=43 // pred_check
        %p557 = pneg %p128
      $region46: #{depthwise_conv2d.1} parent=43 // pred_check_branch
        %559 = sbr.rel (%p557) target = $region48
      $region47: #{depthwise_conv2d.1} parent=43 // pred_region
        %p560 = scmp.lt.s32.totalorder %s16, 1
        %s561 = scalar_select %p560, %s16, 1
        %s562 = smul.addr %s561, 3
        %s563 = smul.addr %s562, 8
        %s564 = scalar_lea.vmem %s4, %s563
      $region48: #{depthwise_conv2d.1} parent=43 // pred_fallthru
        _
    $region44: #{depthwise_conv2d.1} parent=5 // pred_fallthru
      _
  $region6: #{depthwise_conv2d.1} parent=0 // loop_footer
    %s14 = sadd.s32 1, %s10
  $region7: #{depthwise_conv2d.1} parent=0 // loop_footer_branch
    %9 = sbr.rel target = $region3
  $region8: #{depthwise_conv2d.1} parent=0 // loop_exit
    _

</llo_original>
